<compile_context>
chip_gen: v6e
topology: v6e:2x2x1
jax: 0.10.0
libtpu: 0.0.40
codegen_flags: <defaults>
</compile_context>

<pallas_src>
import functools

import jax
import jax.numpy as jnp
from jax import lax
from jax.experimental import pallas as pl
from jax.experimental.pallas import tpu as pltpu


def qnet_kernel(x_ref, w1_ref, b1_ref, w2_ref, b2_ref, w3_ref, b3_ref, out_ref,
                *, compute_dtype):
    """Fused 3-layer MLP on one batch tile.

    x_ref:  [TB, S]  f32   -- native [batch, feature] layout straight from HBM
    w1_ref: [H1, S]  b1_ref: [H1, 1]
    w2_ref: [H2, H1] b2_ref: [H2, 1]
    w3_ref: [A,  H2] b3_ref: [A,  1]
    out_ref:[A,  TB] f32   -- batch on lanes (lane-dense stores)
    """
    # In-kernel cast (VPU) -- avoids a separate XLA transpose+cast pass over
    # the input in HBM.
    x = x_ref[...].astype(compute_dtype)                       # [TB, S]

    # Layer 1: contract the last axes of W1 and x (MXU trans_b path; no
    # materialized transpose), producing [H1, TB] with batch on lanes.
    dn_t = (((1,), (1,)), ((), ()))
    h1 = lax.dot_general(w1_ref[...], x, dn_t,
                         preferred_element_type=jnp.float32)    # [H1, TB]
    h1 = jnp.maximum(h1 + b1_ref[...], 0.0).astype(compute_dtype)

    # Layer 2: h2 = relu(W2 @ h1 + b2)
    h2 = jnp.dot(w2_ref[...], h1, preferred_element_type=jnp.float32)
    h2 = jnp.maximum(h2 + b2_ref[...], 0.0).astype(compute_dtype)

    # Output layer (no activation)
    out = jnp.dot(w3_ref[...], h2, preferred_element_type=jnp.float32) + b3_ref[...]
    out_ref[...] = out.astype(out_ref.dtype)


def _round_up(a, m):
    return (a + m - 1) // m * m


def _cdiv(a, b):
    return -(-a // b)


@functools.partial(jax.jit, static_argnames=("tile_b", "compute_dtype"))
def qnetwork_forward(state, params, *, tile_b=8192, compute_dtype=jnp.bfloat16):
    """Forward pass of QNetwork.

    state:  [B, state_size] f32
    params: (w1, b1, w2, b2, w3, b3) with w_i: [out, in] (PyTorch Linear
            layout), b_i: [out, 1].
    returns [B, action_size] f32.
    """
    w1, b1, w2, b2, w3, b3 = params
    batch, state_size = state.shape
    h1_size = w1.shape[0]
    h2_size = w2.shape[0]
    action_size = w3.shape[0]

    # ---- Batch tiling ------------------------------------------------------
    # Pad only to the 128-lane granule (not to a full tile); choose the tile
    # count so equal-sized tiles divide the padded batch exactly, and keep
    # >=2 (even) tiles whenever there is enough work so v7x's two TensorCores
    # both get tiles of the "parallel" grid axis.
    aligned_b = _round_up(batch, 128)
    num_tiles = max(1, _cdiv(aligned_b, int(tile_b)))
    if aligned_b >= 256:
        num_tiles = max(num_tiles, 2)
        if num_tiles % 2:
            num_tiles += 1
    tb = _round_up(_cdiv(aligned_b, num_tiles), 128)
    padded_b = tb * num_tiles

    # x stays in its native [B, S] f32 layout (no wrapper transpose/cast);
    # the pad only fires for batches that are not already 128-aligned.
    x_in = state
    if padded_b != batch:
        x_in = jnp.pad(state, ((0, padded_b - batch), (0, 0)))

    w1c = w1.astype(compute_dtype)
    w2c = w2.astype(compute_dtype)
    w3c = w3.astype(compute_dtype)
    b1f = b1.astype(jnp.float32)
    b2f = b2.astype(jnp.float32)
    b3f = b3.astype(jnp.float32)

    const2d = lambda i: (0, 0)   # weights/biases: resident in VMEM

    # VMEM budget derived from the actual buffers (double-buffered x/out,
    # resident weights, f32 + bf16 staging of the [64, tb] intermediates),
    # capped below v7x's 64 MiB physical VMEM.
    itemsize = jnp.dtype(compute_dtype).itemsize
    vmem_bytes = (
        2 * tb * state_size * 4                       # x double buffer (f32)
        + 2 * action_size * tb * 4                    # out double buffer (f32)
        + tb * state_size * itemsize                  # in-kernel bf16 copy of x
        + (h1_size + h2_size) * tb * (4 + itemsize)   # h1/h2 f32 acc + bf16 copy
        + 2 * (w1.size + w2.size + w3.size) * itemsize
        + 2 * (b1.size + b2.size + b3.size) * 4
    )
    vmem_limit = int(min(56 * 1024 * 1024, max(16 * 1024 * 1024, 2 * vmem_bytes)))

    out_t = pl.pallas_call(
        functools.partial(qnet_kernel, compute_dtype=compute_dtype),
        out_shape=jax.ShapeDtypeStruct((action_size, padded_b), jnp.float32),
        grid=(num_tiles,),
        in_specs=[
            pl.BlockSpec((tb, state_size), lambda i: (i, 0)),   # x tile (pipelined)
            pl.BlockSpec((h1_size, state_size), const2d),       # W1
            pl.BlockSpec((h1_size, 1), const2d),                # b1
            pl.BlockSpec((h2_size, h1_size), const2d),          # W2
            pl.BlockSpec((h2_size, 1), const2d),                # b2
            pl.BlockSpec((action_size, h2_size), const2d),      # W3
            pl.BlockSpec((action_size, 1), const2d),            # b3
        ],
        out_specs=pl.BlockSpec((action_size, tb), lambda i: (0, i)),
        compiler_params=pltpu.CompilerParams(
            dimension_semantics=("parallel",),   # shard batch tiles over TCs (v7x)
            vmem_limit_bytes=vmem_limit,
        ),
    )(x_in, w1c, b1f, w2c, b2f, w3c, b3f)

    return jnp.transpose(out_t[:, :batch])          # [B, action_size] f32


def init_params(key, state_size, action_size, layers_units=(64, 64)):
    """Deterministic init mimicking nn.Linear's U(-1/sqrt(fan_in), 1/sqrt(fan_in)).

    Weights are [out, in] (PyTorch layout); biases are [out, 1] columns so
    they broadcast along the lane (batch) dimension inside the kernel.
    """
    params = []
    prev = state_size
    dims = list(layers_units) + [action_size]
    for d in dims:
        key, kw, kb = jax.random.split(key, 3)
        bound = 1.0 / (prev ** 0.5)
        w = jax.random.uniform(kw, (d, prev), jnp.float32, -bound, bound)
        b = jax.random.uniform(kb, (d, 1), jnp.float32, -bound, bound)
        params.extend([w, b])
        prev = d
    return tuple(params)


def _ref_forward(state, params, compute_dtype=jnp.bfloat16):
    """Pure-JAX reference with the same bf16-operand / f32-accumulate recipe."""
    w1, b1, w2, b2, w3, b3 = params
    x = state.astype(compute_dtype)
    h = jnp.dot(x, w1.T.astype(compute_dtype),
                preferred_element_type=jnp.float32) + b1.T
    h = jnp.maximum(h, 0.0).astype(compute_dtype)
    h = jnp.dot(h, w2.T.astype(compute_dtype),
                preferred_element_type=jnp.float32) + b2.T
    h = jnp.maximum(h, 0.0).astype(compute_dtype)
    return jnp.dot(h, w3.T.astype(compute_dtype),
                   preferred_element_type=jnp.float32) + b3.T


if __name__ == "__main__":
    state_size = 8
    action_size = 4
    batch = 64  # small; padded to one 128-wide lane tile inside the wrapper
    # NOTE: the kernel is tuned for large batches (>=1024 rows), where the big
    # batch tiles / megacore split pay off; tiny batches are launch-dominated.

    key = jax.random.PRNGKey(0)
    key, k_state = jax.random.split(key)
    state = jax.random.normal(k_state, (batch, state_size), jnp.float32)

    params = init_params(key, state_size, action_size, layers_units=(64, 64))

    out = qnetwork_forward(state, params)
    out = jax.block_until_ready(out)

    ref = _ref_forward(state, params)
    assert out.shape == (batch, action_size)
    assert jnp.allclose(out, ref, atol=2e-3, rtol=2e-3), (
        float(jnp.max(jnp.abs(out - ref))))

    print("KERNEL_OK")
</pallas_src>

<mosaic_0001>
module attributes {stable_mosaic.version = 11 : i64} {
  func.func @qnet_kernel(%arg0: i32, %arg1: memref<128x8xf32, #tpu.memory_space<vmem>>, %arg2: memref<64x8xbf16, #tpu.memory_space<vmem>>, %arg3: memref<64x1xf32, #tpu.memory_space<vmem>>, %arg4: memref<64x64xbf16, #tpu.memory_space<vmem>>, %arg5: memref<64x1xf32, #tpu.memory_space<vmem>>, %arg6: memref<4x64xbf16, #tpu.memory_space<vmem>>, %arg7: memref<4x1xf32, #tpu.memory_space<vmem>>, %arg8: memref<4x128xf32, #tpu.memory_space<vmem>>) attributes {dimension_semantics = [#tpu.dimension_semantics<parallel>], iteration_bounds = array<i64: 1>, scalar_prefetch = 0 : i64, scratch_operands = 0 : i64, tpu.core_type = #tpu.core_type<tc>, window_params = [{transform_indices = @transform_0, window_bounds = array<i64: 128, 8>}, {pipeline_mode = #tpu.pipeline_mode<synchronous>, transform_indices = @transform_1, window_bounds = array<i64: 64, 8>}, {pipeline_mode = #tpu.pipeline_mode<synchronous>, transform_indices = @transform_2, window_bounds = array<i64: 64, 1>}, {pipeline_mode = #tpu.pipeline_mode<synchronous>, transform_indices = @transform_3, window_bounds = array<i64: 64, 64>}, {pipeline_mode = #tpu.pipeline_mode<synchronous>, transform_indices = @transform_4, window_bounds = array<i64: 64, 1>}, {pipeline_mode = #tpu.pipeline_mode<synchronous>, transform_indices = @transform_5, window_bounds = array<i64: 4, 64>}, {pipeline_mode = #tpu.pipeline_mode<synchronous>, transform_indices = @transform_6, window_bounds = array<i64: 4, 1>}, {transform_indices = @transform_7, window_bounds = array<i64: 4, 128>}]} {
    %c0 = arith.constant 0 : index
    %c0_0 = arith.constant 0 : index
    %0 = vector.load %arg1[%c0, %c0_0] : memref<128x8xf32, #tpu.memory_space<vmem>>, vector<128x8xf32>
    %1 = arith.truncf %0 : vector<128x8xf32> to vector<128x8xbf16>
    %c0_1 = arith.constant 0 : index
    %c0_2 = arith.constant 0 : index
    %2 = vector.load %arg2[%c0_1, %c0_2] : memref<64x8xbf16, #tpu.memory_space<vmem>>, vector<64x8xbf16>
    %cst = arith.constant dense<0.000000e+00> : vector<64x128xf32>
    %3 = tpu.matmul %2, %1, %cst {dimension_numbers = #tpu.dot_dimension_numbers<[1], [1], [0], [0], [0, 0, 1, 0], [], []>} : vector<64x8xbf16>, vector<128x8xbf16>, vector<64x128xf32> -> vector<64x128xf32>
    %c0_3 = arith.constant 0 : index
    %c0_4 = arith.constant 0 : index
    %4 = vector.load %arg3[%c0_3, %c0_4] : memref<64x1xf32, #tpu.memory_space<vmem>>, vector<64x1xf32>
    %5 = vector.broadcast %4 : vector<64x1xf32> to vector<64x128xf32>
    %6 = arith.addf %3, %5 : vector<64x128xf32>
    %cst_5 = arith.constant 0.000000e+00 : f32
    %7 = vector.broadcast %cst_5 : f32 to vector<64x128xf32>
    %8 = arith.maximumf %6, %7 : vector<64x128xf32>
    %9 = arith.truncf %8 : vector<64x128xf32> to vector<64x128xbf16>
    %c0_6 = arith.constant 0 : index
    %c0_7 = arith.constant 0 : index
    %10 = vector.load %arg4[%c0_6, %c0_7] : memref<64x64xbf16, #tpu.memory_space<vmem>>, vector<64x64xbf16>
    %cst_8 = arith.constant dense<0.000000e+00> : vector<64x128xf32>
    %11 = tpu.matmul %10, %9, %cst_8 {dimension_numbers = #tpu.dot_dimension_numbers<[1], [0], [0], [1], [0, 0, 1, 1], [], []>} : vector<64x64xbf16>, vector<64x128xbf16>, vector<64x128xf32> -> vector<64x128xf32>
    %c0_9 = arith.constant 0 : index
    %c0_10 = arith.constant 0 : index
    %12 = vector.load %arg5[%c0_9, %c0_10] : memref<64x1xf32, #tpu.memory_space<vmem>>, vector<64x1xf32>
    %13 = vector.broadcast %12 : vector<64x1xf32> to vector<64x128xf32>
    %14 = arith.addf %11, %13 : vector<64x128xf32>
    %cst_11 = arith.constant 0.000000e+00 : f32
    %15 = vector.broadcast %cst_11 : f32 to vector<64x128xf32>
    %16 = arith.maximumf %14, %15 : vector<64x128xf32>
    %17 = arith.truncf %16 : vector<64x128xf32> to vector<64x128xbf16>
    %c0_12 = arith.constant 0 : index
    %c0_13 = arith.constant 0 : index
    %18 = vector.load %arg6[%c0_12, %c0_13] : memref<4x64xbf16, #tpu.memory_space<vmem>>, vector<4x64xbf16>
    %cst_14 = arith.constant dense<0.000000e+00> : vector<4x128xf32>
    %19 = tpu.matmul %18, %17, %cst_14 {dimension_numbers = #tpu.dot_dimension_numbers<[1], [0], [0], [1], [0, 0, 1, 1], [], []>} : vector<4x64xbf16>, vector<64x128xbf16>, vector<4x128xf32> -> vector<4x128xf32>
    %c0_15 = arith.constant 0 : index
    %c0_16 = arith.constant 0 : index
    %20 = vector.load %arg7[%c0_15, %c0_16] : memref<4x1xf32, #tpu.memory_space<vmem>>, vector<4x1xf32>
    %21 = vector.broadcast %20 : vector<4x1xf32> to vector<4x128xf32>
    %22 = arith.addf %19, %21 : vector<4x128xf32>
    %c0_17 = arith.constant 0 : index
    %c0_18 = arith.constant 0 : index
    %23 = vector.load %arg8[%c0_17, %c0_18] : memref<4x128xf32, #tpu.memory_space<vmem>>, vector<4x128xf32>
    tpu.vector_store %arg8[%c0_17, %c0_18], %22 {strides = array<i32>} : memref<4x128xf32, #tpu.memory_space<vmem>>, vector<4x128xf32>,
    return
  }
  func.func @transform_0(%arg0: i32) -> (i32, i32) {
    %c0_i32 = arith.constant 0 : i32
    %c0_i32_0 = arith.constant 0 : i32
    return %arg0, %c0_i32 : i32, i32
  }
  func.func @transform_1(%arg0: i32) -> (i32, i32) {
    %c0_i32 = arith.constant 0 : i32
    %c0_i32_0 = arith.constant 0 : i32
    %c0_i32_1 = arith.constant 0 : i32
    return %c0_i32, %c0_i32_0 : i32, i32
  }
  func.func @transform_2(%arg0: i32) -> (i32, i32) {
    %c0_i32 = arith.constant 0 : i32
    %c0_i32_0 = arith.constant 0 : i32
    %c0_i32_1 = arith.constant 0 : i32
    return %c0_i32, %c0_i32_0 : i32, i32
  }
  func.func @transform_3(%arg0: i32) -> (i32, i32) {
    %c0_i32 = arith.constant 0 : i32
    %c0_i32_0 = arith.constant 0 : i32
    %c0_i32_1 = arith.constant 0 : i32
    return %c0_i32, %c0_i32_0 : i32, i32
  }
  func.func @transform_4(%arg0: i32) -> (i32, i32) {
    %c0_i32 = arith.constant 0 : i32
    %c0_i32_0 = arith.constant 0 : i32
    %c0_i32_1 = arith.constant 0 : i32
    return %c0_i32, %c0_i32_0 : i32, i32
  }
  func.func @transform_5(%arg0: i32) -> (i32, i32) {
    %c0_i32 = arith.constant 0 : i32
    %c0_i32_0 = arith.constant 0 : i32
    %c0_i32_1 = arith.constant 0 : i32
    return %c0_i32, %c0_i32_0 : i32, i32
  }
  func.func @transform_6(%arg0: i32) -> (i32, i32) {
    %c0_i32 = arith.constant 0 : i32
    %c0_i32_0 = arith.constant 0 : i32
    %c0_i32_1 = arith.constant 0 : i32
    return %c0_i32, %c0_i32_0 : i32, i32
  }
  func.func @transform_7(%arg0: i32) -> (i32, i32) {
    %c0_i32 = arith.constant 0 : i32
    %c0_i32_0 = arith.constant 0 : i32
    return %c0_i32, %arg0 : i32, i32
  }
}

</mosaic_0001>

<llo_original>
// kernel: qnetwork_forward.1
$region0: #{qnetwork_forward.1}
  #allocation0 [shape = 'u32[]', space=smem, size = 0x4, offset = 0x4, fixed_abs, tag = 'smem constant byte address 0x4 - core index']
  #allocation1 [shape = 'u32[144,128]{1,0:T(1,128)}', space=vmem, size = 0x12000, scoped, tag = 'internal scratch']
  %s0 = inlined_call_operand.vmem [shape: f32[128,8], index: 0, kind: input, shape index: {}]
  %s1 = inlined_call_operand.vmem [shape: bf16[64,8], index: 1, kind: input, shape index: {}]
  %s2 = inlined_call_operand.vmem [shape: f32[64,1], index: 2, kind: input, shape index: {}]
  %s3 = inlined_call_operand.vmem [shape: bf16[64,64], index: 3, kind: input, shape index: {}]
  %s4 = inlined_call_operand.vmem [shape: f32[64,1], index: 4, kind: input, shape index: {}]
  %s5 = inlined_call_operand.vmem [shape: bf16[4,64], index: 5, kind: input, shape index: {}]
  %s6 = inlined_call_operand.vmem [shape: f32[4,1], index: 6, kind: input, shape index: {}]
  %s7 = inlined_call_operand.vmem [shape: f32[4,128], index: 7, kind: output, shape index: {}]
  %s8 = sld [smem:[#allocation0]]
  $region38: #{qnetwork_forward.1} parent=0
    _
  %s10 = ssub.s32 1, %s8
  %s11 = scalar_select 0, %s10, %s8
  // Predicated region
  $region2: #{qnetwork_forward.1} parent=0 // pred_check
    _
  $region3: #{qnetwork_forward.1} parent=0 // pred_check_branch
    %13 = sbr.rel (0) target = $region5
  $region4: #{qnetwork_forward.1} parent=0 // pred_region
    _
  $region5: #{qnetwork_forward.1} parent=0 // pred_fallthru
    _
  // Predicated region
  $region6: #{qnetwork_forward.1} parent=0 // pred_check
    _
  $region7: #{qnetwork_forward.1} parent=0 // pred_check_branch
    %15 = sbr.rel (0) target = $region9
  $region8: #{qnetwork_forward.1} parent=0 // pred_region
    _
  $region9: #{qnetwork_forward.1} parent=0 // pred_fallthru
    _
  // Predicated region
  $region10: #{qnetwork_forward.1} parent=0 // pred_check
    _
  $region11: #{qnetwork_forward.1} parent=0 // pred_check_branch
    %17 = sbr.rel (0) target = $region13
  $region12: #{qnetwork_forward.1} parent=0 // pred_region
    _
  $region13: #{qnetwork_forward.1} parent=0 // pred_fallthru
    _
  // Predicated region
  $region14: #{qnetwork_forward.1} parent=0 // pred_check
    _
  $region15: #{qnetwork_forward.1} parent=0 // pred_check_branch
    %19 = sbr.rel (0) target = $region17
  $region16: #{qnetwork_forward.1} parent=0 // pred_region
    _
  $region17: #{qnetwork_forward.1} parent=0 // pred_fallthru
    _
  // Predicated region
  $region18: #{qnetwork_forward.1} parent=0 // pred_check
    _
  $region19: #{qnetwork_forward.1} parent=0 // pred_check_branch
    %21 = sbr.rel (0) target = $region21
  $region20: #{qnetwork_forward.1} parent=0 // pred_region
    _
  $region21: #{qnetwork_forward.1} parent=0 // pred_fallthru
    _
  // Predicated region
  $region22: #{qnetwork_forward.1} parent=0 // pred_check
    _
  $region23: #{qnetwork_forward.1} parent=0 // pred_check_branch
    %23 = sbr.rel (0) target = $region25
  $region24: #{qnetwork_forward.1} parent=0 // pred_region
    _
  $region25: #{qnetwork_forward.1} parent=0 // pred_fallthru
    _
  // Predicated region
  $region26: #{qnetwork_forward.1} parent=0 // pred_check
    _
  $region27: #{qnetwork_forward.1} parent=0 // pred_check_branch
    %25 = sbr.rel (0) target = $region29
  $region28: #{qnetwork_forward.1} parent=0 // pred_region
    _
  $region29: #{qnetwork_forward.1} parent=0 // pred_fallthru
    _
  %v27 = vld [vmem:[%s0] sm:$0xff]
  %v28 = vld [vmem:[%s0 + $0x8] sm:$0xff]
  %v29 = vld [vmem:[%s0 + $0x10] sm:$0xff]
  %v30 = vld [vmem:[%s0 + $0x18] sm:$0xff]
  %v31 = vld [vmem:[%s0 + $0x20] sm:$0xff]
  %v32 = vld [vmem:[%s0 + $0x28] sm:$0xff]
  %v33 = vld [vmem:[%s0 + $0x30] sm:$0xff]
  %v34 = vld [vmem:[%s0 + $0x38] sm:$0xff]
  %v35 = vld [vmem:[%s0 + $0x40] sm:$0xff]
  %v36 = vld [vmem:[%s0 + $0x48] sm:$0xff]
  %v37 = vld [vmem:[%s0 + $0x50] sm:$0xff]
  %v38 = vld [vmem:[%s0 + $0x58] sm:$0xff]
  %v39 = vld [vmem:[%s0 + $0x60] sm:$0xff]
  %v40 = vld [vmem:[%s0 + $0x68] sm:$0xff]
  %v41 = vld [vmem:[%s0 + $0x70] sm:$0xff]
  %v42 = vld [vmem:[%s0 + $0x78] sm:$0xff]
  %v43 = vpack.c.bf16 %v28, %v27
  %v44 = vpack.c.bf16 %v30, %v29
  %v45 = vpack.c.bf16 %v32, %v31
  %v46 = vpack.c.bf16 %v34, %v33
  %v47 = vpack.c.bf16 %v36, %v35
  %v48 = vpack.c.bf16 %v38, %v37
  %v49 = vpack.c.bf16 %v40, %v39
  %v50 = vpack.c.bf16 %v42, %v41
  %v51 = vld [vmem:[%s1] sm:$0xf]
  %v52 = vld [vmem:[%s1 + $0x4] sm:$0xf]
  %v53 = vld [vmem:[%s1 + $0x8] sm:$0xf]
  %v54 = vld [vmem:[%s1 + $0xc] sm:$0xf]
  %v55 = vld [vmem:[%s1 + $0x10] sm:$0xf]
  %v56 = vld [vmem:[%s1 + $0x14] sm:$0xf]
  %v57 = vld [vmem:[%s1 + $0x18] sm:$0xf]
  %v58 = vld [vmem:[%s1 + $0x1c] sm:$0xf]
  %v59 = vld [vmem:[%s2] sm:$0xff]
  %v60 = vld [vmem:[%s2 + $0x8] sm:$0xff]
  %v61 = vld [vmem:[%s2 + $0x10] sm:$0xff]
  %v62 = vld [vmem:[%s2 + $0x18] sm:$0xff]
  %v63 = vld [vmem:[%s2 + $0x20] sm:$0xff]
  %v64 = vld [vmem:[%s2 + $0x28] sm:$0xff]
  %v65 = vld [vmem:[%s2 + $0x30] sm:$0xff]
  %v66 = vld [vmem:[%s2 + $0x38] sm:$0xff]
  %68 = vset.pattern.permute.xlu0 0
  %69 = vperm.xlu0 %68, %v59
  %v70 = vpop.permute.xlu0 %69
  %73 = vset.pattern.permute.xlu0 0
  %74 = vperm.xlu0 %73, %v60
  %v75 = vpop.permute.xlu0 %74
  %78 = vset.pattern.permute.xlu0 0
  %79 = vperm.xlu0 %78, %v61
  %v80 = vpop.permute.xlu0 %79
  %83 = vset.pattern.permute.xlu0 0
  %84 = vperm.xlu0 %83, %v62
  %v85 = vpop.permute.xlu0 %84
  %88 = vset.pattern.permute.xlu0 0
  %89 = vperm.xlu0 %88, %v63
  %v90 = vpop.permute.xlu0 %89
  %93 = vset.pattern.permute.xlu0 0
  %94 = vperm.xlu0 %93, %v64
  %v95 = vpop.permute.xlu0 %94
  %98 = vset.pattern.permute.xlu0 0
  %99 = vperm.xlu0 %98, %v65
  %v100 = vpop.permute.xlu0 %99
  %103 = vset.pattern.permute.xlu0 0
  %104 = vperm.xlu0 %103, %v66
  %v105 = vpop.permute.xlu0 %104
  %v115 = vunpack.c.l.b16 %v51
  %v116 = vunpack.c.l.b16 %v52
  %v117 = vunpack.c.l.b16 %v53
  %v118 = vunpack.c.l.b16 %v54
  %v119 = vunpack.c.l.b16 %v55
  %v120 = vunpack.c.l.b16 %v56
  %v121 = vunpack.c.l.b16 %v57
  %v122 = vunpack.c.l.b16 %v58
  %v123 = vpack.c.b16 %v116, %v115
  %v124 = vpack.c.b16 %v118, %v117
  %v125 = vpack.c.b16 %v120, %v119
  %v126 = vpack.c.b16 %v122, %v121
  %vm127 = vcmask 64512
  %v129 = vsel %vm127, %v123, 0
  %v132 = vsel %vm127, %v124, 0
  %v135 = vsel %vm127, %v125, 0
  %v138 = vsel %vm127, %v126, 0
  %v141 = vsel %vm127, %v43, 0
  %v144 = vsel %vm127, %v44, 0
  %v147 = vsel %vm127, %v45, 0
  %v150 = vsel %vm127, %v46, 0
  %v153 = vsel %vm127, %v47, 0
  %v156 = vsel %vm127, %v48, 0
  %v159 = vsel %vm127, %v49, 0
  %v162 = vsel %vm127, %v50, 0
  %164 = vmatprep.subr.bf16.mxu0 0
  %165 = vmatpush1.bf16.xpose.msra.mxu0 %v162
  %166 = vmatprep.subr.bf16.mxu0 0
  %167 = vmatpush1.bf16.xpose.msra.mxu0 %v159
  %168 = vmatprep.subr.bf16.mxu0 0
  %169 = vmatpush1.bf16.xpose.msra.mxu0 %v156
  %170 = vmatprep.subr.bf16.mxu0 0
  %171 = vmatpush1.bf16.xpose.msra.mxu0 %v153
  %172 = vmatprep.subr.bf16.mxu0 0
  %173 = vmatpush1.bf16.xpose.msra.mxu0 %v150
  %174 = vmatprep.subr.bf16.mxu0 0
  %175 = vmatpush1.bf16.xpose.msra.mxu0 %v147
  %176 = vmatprep.subr.bf16.mxu0 0
  %177 = vmatpush1.bf16.xpose.msra.mxu0 %v144
  %178 = vmatprep.subr.bf16.mxu0 0
  %179 = vmatpush1.bf16.xpose.msra.mxu0 %v141
  %180 = vmatprep.subr.bf16.mxu0 0
  %181 = vmatpush2.bf16.xpose.msra.mxu0 0
  %182 = vmatprep.subr.bf16.mxu0 0
  %183 = vmatpush2.bf16.xpose.msra.mxu0 0
  %184 = vmatprep.subr.bf16.mxu0 0
  %185 = vmatpush2.bf16.xpose.msra.mxu0 0
  %186 = vmatprep.subr.bf16.mxu0 0
  %187 = vmatpush2.bf16.xpose.msra.mxu0 0
  %188 = vmatprep.subr.bf16.mxu0 0
  %189 = vmatpush2.bf16.xpose.msra.mxu0 0
  %190 = vmatprep.subr.bf16.mxu0 0
  %191 = vmatpush2.bf16.xpose.msra.mxu0 0
  %192 = vmatprep.subr.bf16.mxu0 0
  %193 = vmatpush2.bf16.xpose.msra.mxu0 0
  %194 = vmatprep.subr.bf16.mxu0 0
  %195 = vmatpush2.bf16.xpose.msra.mxu0 0
  %196 = vmatprep.mubr.bf16.mxu0 0
  %197 = vmatmul.mubr.bf16.gmra.mxu0 %v129
  %v198 = vpop.f32.mrf.mxu0
  %v199 = vadd.f32 %v70, %v198
  %v200 = vpop.f32.mrf.mxu0
  %v201 = vpop.f32.mrf.mxu0
  %v202 = vadd.f32 %v75, %v201
  %v203 = vpop.f32.mrf.mxu0
  %204 = vmatprep.mubr.bf16.mxu0 0
  %205 = vmatmul.mubr.bf16.gmra.mxu0 %v132
  %v206 = vpop.f32.mrf.mxu0
  %v207 = vadd.f32 %v80, %v206
  %v208 = vpop.f32.mrf.mxu0
  %v209 = vpop.f32.mrf.mxu0
  %v210 = vadd.f32 %v85, %v209
  %v211 = vpop.f32.mrf.mxu0
  %212 = vmatprep.mubr.bf16.mxu0 0
  %213 = vmatmul.mubr.bf16.gmra.mxu0 %v135
  %v214 = vpop.f32.mrf.mxu0
  %v215 = vadd.f32 %v90, %v214
  %v216 = vpop.f32.mrf.mxu0
  %v217 = vpop.f32.mrf.mxu0
  %v218 = vadd.f32 %v95, %v217
  %v219 = vpop.f32.mrf.mxu0
  %220 = vmatprep.mubr.bf16.mxu0 0
  %221 = vmatmul.mubr.bf16.gmra.mxu0 %v138
  %v222 = vpop.f32.mrf.mxu0
  %v223 = vadd.f32 %v100, %v222
  %v224 = vpop.f32.mrf.mxu0
  %v225 = vpop.f32.mrf.mxu0
  %v226 = vadd.f32 %v105, %v225
  %v227 = vpop.f32.mrf.mxu0
  %228 = vdwg.mxu0
  %v229 = vmax.f32 %v199, 0.0
  %v230 = vmax.f32 %v202, 0.0
  %v231 = vmax.f32 %v207, 0.0
  %v232 = vmax.f32 %v210, 0.0
  %v233 = vmax.f32 %v215, 0.0
  %v234 = vmax.f32 %v218, 0.0
  %v235 = vmax.f32 %v223, 0.0
  %v236 = vmax.f32 %v226, 0.0
  %v237 = vpack.c.bf16 %v230, %v229
  %v238 = vpack.c.bf16 %v232, %v231
  %v239 = vpack.c.bf16 %v234, %v233
  %v240 = vpack.c.bf16 %v236, %v235
  %v241 = vld [vmem:[%s3] sm:$0xf]
  %v242 = vld [vmem:[%s3 + $0x4] sm:$0xf]
  %v243 = vld [vmem:[%s3 + $0x8] sm:$0xf]
  %v244 = vld [vmem:[%s3 + $0xc] sm:$0xf]
  %v245 = vld [vmem:[%s3 + $0x10] sm:$0xf]
  %v246 = vld [vmem:[%s3 + $0x14] sm:$0xf]
  %v247 = vld [vmem:[%s3 + $0x18] sm:$0xf]
  %v248 = vld [vmem:[%s3 + $0x1c] sm:$0xf]
  %v249 = vld [vmem:[%s4] sm:$0xff]
  %v250 = vld [vmem:[%s4 + $0x8] sm:$0xff]
  %v251 = vld [vmem:[%s4 + $0x10] sm:$0xff]
  %v252 = vld [vmem:[%s4 + $0x18] sm:$0xff]
  %v253 = vld [vmem:[%s4 + $0x20] sm:$0xff]
  %v254 = vld [vmem:[%s4 + $0x28] sm:$0xff]
  %v255 = vld [vmem:[%s4 + $0x30] sm:$0xff]
  %v256 = vld [vmem:[%s4 + $0x38] sm:$0xff]
  %258 = vset.pattern.permute.xlu0 0
  %259 = vperm.xlu0 %258, %v249
  %v260 = vpop.permute.xlu0 %259
  %263 = vset.pattern.permute.xlu0 0
  %264 = vperm.xlu0 %263, %v250
  %v265 = vpop.permute.xlu0 %264
  %268 = vset.pattern.permute.xlu0 0
  %269 = vperm.xlu0 %268, %v251
  %v270 = vpop.permute.xlu0 %269
  %273 = vset.pattern.permute.xlu0 0
  %274 = vperm.xlu0 %273, %v252
  %v275 = vpop.permute.xlu0 %274
  %278 = vset.pattern.permute.xlu0 0
  %279 = vperm.xlu0 %278, %v253
  %v280 = vpop.permute.xlu0 %279
  %283 = vset.pattern.permute.xlu0 0
  %284 = vperm.xlu0 %283, %v254
  %v285 = vpop.permute.xlu0 %284
  %288 = vset.pattern.permute.xlu0 0
  %289 = vperm.xlu0 %288, %v255
  %v290 = vpop.permute.xlu0 %289
  %293 = vset.pattern.permute.xlu0 0
  %294 = vperm.xlu0 %293, %v256
  %v295 = vpop.permute.xlu0 %294
  %v305 = vunpack.c.l.b16 %v241
  %v306 = vunpack.c.l.b16 %v242
  %v307 = vunpack.c.l.b16 %v243
  %v308 = vunpack.c.l.b16 %v244
  %v309 = vunpack.c.l.b16 %v245
  %v310 = vunpack.c.l.b16 %v246
  %v311 = vunpack.c.l.b16 %v247
  %v312 = vunpack.c.l.b16 %v248
  %v313 = vpack.c.b16 %v306, %v305
  %v314 = vpack.c.b16 %v308, %v307
  %v315 = vpack.c.b16 %v310, %v309
  %v316 = vpack.c.b16 %v312, %v311
  %vm317 = vcmask 523264
  %v319 = vsel %vm317, %v313, 0
  %v322 = vsel %vm317, %v314, 0
  %v325 = vsel %vm317, %v315, 0
  %v328 = vsel %vm317, %v316, 0
  %330 = vmatprep.subr.bf16.mxu0 0
  %331 = vmatpush1.bf16.msra.mxu0 0
  %332 = vmatprep.subr.bf16.mxu0 0
  %333 = vmatpush1.bf16.msra.mxu0 0
  %334 = vmatprep.subr.bf16.mxu0 0
  %335 = vmatpush1.bf16.msra.mxu0 0
  %336 = vmatprep.subr.bf16.mxu0 0
  %337 = vmatpush1.bf16.msra.mxu0 0
  %338 = vmatprep.subr.bf16.mxu0 0
  %339 = vmatpush1.bf16.msra.mxu0 %v240
  %340 = vmatprep.subr.bf16.mxu0 0
  %341 = vmatpush1.bf16.msra.mxu0 %v239
  %342 = vmatprep.subr.bf16.mxu0 0
  %343 = vmatpush1.bf16.msra.mxu0 %v238
  %344 = vmatprep.subr.bf16.mxu0 0
  %345 = vmatpush1.bf16.msra.mxu0 %v237
  %346 = vmatprep.subr.bf16.mxu0 0
  %347 = vmatpush2.bf16.msra.mxu0 0
  %348 = vmatprep.subr.bf16.mxu0 0
  %349 = vmatpush2.bf16.msra.mxu0 0
  %350 = vmatprep.subr.bf16.mxu0 0
  %351 = vmatpush2.bf16.msra.mxu0 0
  %352 = vmatprep.subr.bf16.mxu0 0
  %353 = vmatpush2.bf16.msra.mxu0 0
  %354 = vmatprep.subr.bf16.mxu0 0
  %355 = vmatpush2.bf16.msra.mxu0 0
  %356 = vmatprep.subr.bf16.mxu0 0
  %357 = vmatpush2.bf16.msra.mxu0 0
  %358 = vmatprep.subr.bf16.mxu0 0
  %359 = vmatpush2.bf16.msra.mxu0 0
  %360 = vmatprep.subr.bf16.mxu0 0
  %361 = vmatpush2.bf16.msra.mxu0 0
  %362 = vmatprep.mubr.bf16.mxu0 0
  %363 = vmatmul.mubr.bf16.gmra.mxu0 %v319
  %v364 = vpop.f32.mrf.mxu0
  %v365 = vadd.f32 %v260, %v364
  %v366 = vpop.f32.mrf.mxu0
  %v367 = vpop.f32.mrf.mxu0
  %v368 = vadd.f32 %v265, %v367
  %v369 = vpop.f32.mrf.mxu0
  %370 = vmatprep.mubr.bf16.mxu0 0
  %371 = vmatmul.mubr.bf16.gmra.mxu0 %v322
  %v372 = vpop.f32.mrf.mxu0
  %v373 = vadd.f32 %v270, %v372
  %v374 = vpop.f32.mrf.mxu0
  %v375 = vpop.f32.mrf.mxu0
  %v376 = vadd.f32 %v275, %v375
  %v377 = vpop.f32.mrf.mxu0
  %378 = vmatprep.mubr.bf16.mxu0 0
  %379 = vmatmul.mubr.bf16.gmra.mxu0 %v325
  %v380 = vpop.f32.mrf.mxu0
  %v381 = vadd.f32 %v280, %v380
  %v382 = vpop.f32.mrf.mxu0
  %v383 = vpop.f32.mrf.mxu0
  %v384 = vadd.f32 %v285, %v383
  %v385 = vpop.f32.mrf.mxu0
  %386 = vmatprep.mubr.bf16.mxu0 0
  %387 = vmatmul.mubr.bf16.gmra.mxu0 %v328
  %v388 = vpop.f32.mrf.mxu0
  %v389 = vadd.f32 %v290, %v388
  %v390 = vpop.f32.mrf.mxu0
  %v391 = vpop.f32.mrf.mxu0
  %v392 = vadd.f32 %v295, %v391
  %v393 = vpop.f32.mrf.mxu0
  %394 = vdwg.mxu0
  %v395 = vmax.f32 %v365, 0.0
  %v396 = vmax.f32 %v368, 0.0
  %v397 = vmax.f32 %v373, 0.0
  %v398 = vmax.f32 %v376, 0.0
  %v399 = vmax.f32 %v381, 0.0
  %v400 = vmax.f32 %v384, 0.0
  %v401 = vmax.f32 %v389, 0.0
  %v402 = vmax.f32 %v392, 0.0
  %v403 = vpack.c.bf16 %v396, %v395
  %v404 = vpack.c.bf16 %v398, %v397
  %v405 = vpack.c.bf16 %v400, %v399
  %v406 = vpack.c.bf16 %v402, %v401
  %v407 = vld [vmem:[%s5] sm:$0x3]
  %v408 = vld [vmem:[%s6] sm:$0xf]
  %410 = vset.pattern.permute.xlu0 0
  %411 = vperm.xlu0 %410, %v408
  %v412 = vpop.permute.xlu0 %411
  %v415 = vsel %vm317, %v407, 0
  %417 = vmatprep.subr.bf16.mxu0 0
  %418 = vmatpush1.bf16.msra.mxu0 0
  %419 = vmatprep.subr.bf16.mxu0 0
  %420 = vmatpush1.bf16.msra.mxu0 0
  %421 = vmatprep.subr.bf16.mxu0 0
  %422 = vmatpush1.bf16.msra.mxu0 0
  %423 = vmatprep.subr.bf16.mxu0 0
  %424 = vmatpush1.bf16.msra.mxu0 0
  %425 = vmatprep.subr.bf16.mxu0 0
  %426 = vmatpush1.bf16.msra.mxu0 %v406
  %427 = vmatprep.subr.bf16.mxu0 0
  %428 = vmatpush1.bf16.msra.mxu0 %v405
  %429 = vmatprep.subr.bf16.mxu0 0
  %430 = vmatpush1.bf16.msra.mxu0 %v404
  %431 = vmatprep.subr.bf16.mxu0 0
  %432 = vmatpush1.bf16.msra.mxu0 %v403
  %433 = vmatprep.subr.bf16.mxu0 0
  %434 = vmatpush2.bf16.msra.mxu0 0
  %435 = vmatprep.subr.bf16.mxu0 0
  %436 = vmatpush2.bf16.msra.mxu0 0
  %437 = vmatprep.subr.bf16.mxu0 0
  %438 = vmatpush2.bf16.msra.mxu0 0
  %439 = vmatprep.subr.bf16.mxu0 0
  %440 = vmatpush2.bf16.msra.mxu0 0
  %441 = vmatprep.subr.bf16.mxu0 0
  %442 = vmatpush2.bf16.msra.mxu0 0
  %443 = vmatprep.subr.bf16.mxu0 0
  %444 = vmatpush2.bf16.msra.mxu0 0
  %445 = vmatprep.subr.bf16.mxu0 0
  %446 = vmatpush2.bf16.msra.mxu0 0
  %447 = vmatprep.subr.bf16.mxu0 0
  %448 = vmatpush2.bf16.msra.mxu0 0
  %449 = vmatprep.mubr.bf16.mxu0 0
  %450 = vmatmul.mubr.bf16.gmra.mxu0 %v415
  %v451 = vpop.f32.mrf.mxu0
  %v452 = vadd.f32 %v412, %v451
  %v453 = vpop.f32.mrf.mxu0
  %v454 = vpop.f32.mrf.mxu0
  %v455 = vpop.f32.mrf.mxu0
  %456 = vdwg.mxu0
  %457 = vst [vmem:[%s7] sm:$0xf] %v452
  // Predicated region
  $region30: #{qnetwork_forward.1} parent=0 // pred_check
    _
  $region31: #{qnetwork_forward.1} parent=0 // pred_check_branch
    %459 = sbr.rel (0) target = $region33
  $region32: #{qnetwork_forward.1} parent=0 // pred_region
    _
  $region33: #{qnetwork_forward.1} parent=0 // pred_fallthru
    _
  // Predicated region
  $region34: #{qnetwork_forward.1} parent=0 // pred_check
    _
  $region35: #{qnetwork_forward.1} parent=0 // pred_check_branch
    %461 = sbr.rel (0) target = $region37
  $region36: #{qnetwork_forward.1} parent=0 // pred_region
    _
  $region37: #{qnetwork_forward.1} parent=0 // pred_fallthru
    _

</llo_original>
